<compile_context>
chip_gen: v7x
topology: tpu7x:2x2x1
jax: 0.10.0
libtpu: 0.0.40
codegen_flags: <defaults>
</compile_context>

<pallas_src>
import functools

import jax
import jax.numpy as jnp
from jax.experimental import pallas as pl
from jax.experimental.pallas import tpu as pltpu

LANE = 128     # vreg lane width / MXU tile edge
SUBLANE = 8    # vreg sublane count


def _round_up(n, m):
    return ((n + m - 1) // m) * m


def blob_mlp_kernel(x_ref, w1_ref, b1_ref, w2_ref, b2_ref, w3_ref, b3_ref,
                    o_ref, *, in_features, out_features):
    # x_ref: [tile_b, in_features] f32 (un-padded lanes).
    # w1: [in_features, H_PAD]; w2: [H_PAD, H_PAD]; w3: [H_PAD, O_PAD];
    # biases: [1, *_PAD].  All f32, VMEM-resident across grid steps.
    x = x_ref[...]

    # Layer 1 on the VPU: in_features is tiny (2), so a couple of
    # column-broadcast MACs replace a padded MXU matmul and let x stay
    # un-padded in HBM.  Padded hidden lanes stay exactly zero (w1/b1 pads
    # are zero), so downstream matmuls are exact for the real columns.
    acc = x[:, 0:1] * w1_ref[0:1, :]
    for k in range(1, in_features):
        acc = acc + x[:, k:k + 1] * w1_ref[k:k + 1, :]
    h1 = jnp.maximum(acc + b1_ref[...], 0.0)            # [tile_b, H_PAD]

    # Layer 2: clean 128x128 MXU matmul, f32 accumulate; bias+ReLU on VPU.
    h2 = jnp.dot(h1, w2_ref[...], preferred_element_type=jnp.float32)
    h2 = jnp.maximum(h2 + b2_ref[...], 0.0)             # [tile_b, H_PAD]

    # Layer 3 (no activation).  w3/b3 are zero-padded to 128 output lanes so
    # the matmul shape stays canonical; only the real out_features columns
    # are stored (compact HBM writeback).
    out = jnp.dot(h2, w3_ref[...], preferred_element_type=jnp.float32)
    out = out + b3_ref[...]
    o_ref[...] = out[:, :out_features].astype(o_ref.dtype)


def init_params(key, input_features, output_features, hidden_units=8):
    """PyTorch-nn.Linear-like uniform init; weights stored as [in, out]."""
    ks = jax.random.split(key, 6)

    def linear_init(kw, kb, fan_in, fan_out):
        bound = 1.0 / jnp.sqrt(jnp.float32(fan_in))
        w = jax.random.uniform(kw, (fan_in, fan_out), jnp.float32, -bound, bound)
        b = jax.random.uniform(kb, (1, fan_out), jnp.float32, -bound, bound)
        return w, b

    w1, b1 = linear_init(ks[0], ks[1], input_features, hidden_units)
    w2, b2 = linear_init(ks[2], ks[3], hidden_units, hidden_units)
    w3, b3 = linear_init(ks[4], ks[5], hidden_units, output_features)
    return dict(w1=w1, b1=b1, w2=w2, b2=b2, w3=w3, b3=b3)


def pad_params_for_tpu(params):
    """One-time host-side prep: zero-pad ONLY the tiny weights/biases so the
    in-kernel matmuls use canonical 128-lane shapes.  x and the output stay
    un-padded (they are the HBM traffic that matters).  Everything stays f32
    (weights are resident; dtype costs nothing here)."""
    in_f = params["w1"].shape[0]
    hid = params["w1"].shape[1]
    out_f = params["w3"].shape[1]
    h_pad = _round_up(hid, LANE)
    o_pad = _round_up(out_f, LANE)

    def pad2(a, rows, cols):
        out = jnp.zeros((rows, cols), jnp.float32)
        return out.at[:a.shape[0], :a.shape[1]].set(a.astype(jnp.float32))

    return dict(
        w1=pad2(params["w1"], in_f, h_pad),
        b1=pad2(params["b1"], 1, h_pad),
        w2=pad2(params["w2"], h_pad, h_pad),
        b2=pad2(params["b2"], 1, h_pad),
        w3=pad2(params["w3"], h_pad, o_pad),
        b3=pad2(params["b3"], 1, o_pad),
        in_features=in_f,
        out_features=out_f,
    )


def blob_model_forward(x, padded_params, *, max_tile_b=1024):
    """Forward pass of BlobModel via one gridded Pallas kernel.

    x: [batch, input_features] float32 (passed un-padded to the kernel)
    padded_params: output of pad_params_for_tpu()
    max_tile_b: batch tile upper bound (sweep 512/1024/2048/4096).
    """
    batch, in_f = x.shape
    p = padded_params
    assert in_f == p["in_features"]
    out_f = p["out_features"]
    h_pad = p["w1"].shape[1]
    o_pad = p["w3"].shape[1]

    # Batch tile (sublane axis).  Cap at ceil(batch/2) (rounded to a sublane
    # multiple) so the grid has >=2 steps when batch allows -> both v7x
    # TensorCores participate via dimension_semantics=("parallel",).
    half = max(SUBLANE, _round_up(pl.cdiv(batch, 2), SUBLANE))
    tile_b = min(max_tile_b, half)
    batch_pad = _round_up(batch, tile_b)
    grid = (batch_pad // tile_b,)

    # Row-pad only (layout plumbing; no lane padding, no dtype pass).
    x_in = x.astype(jnp.float32)
    if batch_pad != batch:
        x_in = jnp.pad(x_in, ((0, batch_pad - batch), (0, 0)))

    def resident(shape):
        # Weights/biases: same block every grid step -> stays in VMEM.
        return pl.BlockSpec(shape, lambda i: (0, 0))

    kernel = functools.partial(
        blob_mlp_kernel, in_features=in_f, out_features=out_f)

    # VMEM budget (v7x-safe): 2x(tile_b,in_f) f32 + 2x(tile_b,out_f) f32
    # tiles + ~130 KiB resident weights + two (tile_b, h_pad) f32 temporaries
    # ~= 1.2 MiB at tile_b=1024 -- far below the 32 MiB default scoped limit.
    out_padded = pl.pallas_call(
        kernel,
        out_shape=jax.ShapeDtypeStruct((batch_pad, out_f), jnp.float32),
        grid=grid,
        in_specs=[
            pl.BlockSpec((tile_b, in_f), lambda i: (i, 0)),  # x: per-tile DMA
            resident((in_f, h_pad)),                         # w1
            resident((1, h_pad)),                            # b1
            resident((h_pad, h_pad)),                        # w2
            resident((1, h_pad)),                            # b2
            resident((h_pad, o_pad)),                        # w3
            resident((1, o_pad)),                            # b3
        ],
        out_specs=pl.BlockSpec((tile_b, out_f), lambda i: (i, 0)),
        compiler_params=pltpu.CompilerParams(
            dimension_semantics=("parallel",)),  # batch tiles are independent
    )(x_in, p["w1"], p["b1"], p["w2"], p["b2"], p["w3"], p["b3"])

    # Drop padded rows only (columns are already compact).
    return out_padded[:batch] if batch_pad != batch else out_padded


def reference_forward(x, p):
    """Plain-JAX f32 reference for correctness check (unpadded params)."""
    h1 = jnp.maximum(x @ p["w1"] + p["b1"], 0.0)
    h2 = jnp.maximum(h1 @ p["w2"] + p["b2"], 0.0)
    return h2 @ p["w3"] + p["b3"]


if __name__ == "__main__":
    # BlobModel(input_features=2, output_features=4, hidden_units=8) on a
    # small batch of blob points.
    INPUT_FEATURES = 2
    OUTPUT_FEATURES = 4
    HIDDEN = 8
    BATCH = 8

    key = jax.random.PRNGKey(0)
    key_x, key_p = jax.random.split(key)

    x = jax.random.normal(key_x, (BATCH, INPUT_FEATURES), dtype=jnp.float32)
    params = init_params(key_p, INPUT_FEATURES, OUTPUT_FEATURES, HIDDEN)
    padded = pad_params_for_tpu(params)   # one-time weight prep

    out = blob_model_forward(x, padded)
    out = jax.block_until_ready(out)

    ref = reference_forward(x, params)
    assert out.shape == (BATCH, OUTPUT_FEATURES)
    # f32 activations end-to-end; tolerance covers MXU default-precision dots.
    assert jnp.allclose(out, ref, atol=3e-2, rtol=3e-2), "mismatch vs reference"

    print("KERNEL_OK")
</pallas_src>

<mosaic_0001>
module attributes {stable_mosaic.version = 11 : i64} {
  func.func @blob_mlp_kernel(%arg0: i32, %arg1: memref<8x2xf32, #tpu.memory_space<vmem>>, %arg2: memref<2x128xf32, #tpu.memory_space<vmem>>, %arg3: memref<1x128xf32, #tpu.memory_space<vmem>>, %arg4: memref<128x128xf32, #tpu.memory_space<vmem>>, %arg5: memref<1x128xf32, #tpu.memory_space<vmem>>, %arg6: memref<128x128xf32, #tpu.memory_space<vmem>>, %arg7: memref<1x128xf32, #tpu.memory_space<vmem>>, %arg8: memref<8x4xf32, #tpu.memory_space<vmem>>) attributes {dimension_semantics = [#tpu.dimension_semantics<parallel>], iteration_bounds = array<i64: 1>, scalar_prefetch = 0 : i64, scratch_operands = 0 : i64, tpu.core_type = #tpu.core_type<tc>, window_params = [{transform_indices = @transform_0, window_bounds = array<i64: 8, 2>}, {pipeline_mode = #tpu.pipeline_mode<synchronous>, transform_indices = @transform_1, window_bounds = array<i64: 2, 128>}, {pipeline_mode = #tpu.pipeline_mode<synchronous>, transform_indices = @transform_2, window_bounds = array<i64: 1, 128>}, {pipeline_mode = #tpu.pipeline_mode<synchronous>, transform_indices = @transform_3, window_bounds = array<i64: 128, 128>}, {pipeline_mode = #tpu.pipeline_mode<synchronous>, transform_indices = @transform_4, window_bounds = array<i64: 1, 128>}, {pipeline_mode = #tpu.pipeline_mode<synchronous>, transform_indices = @transform_5, window_bounds = array<i64: 128, 128>}, {pipeline_mode = #tpu.pipeline_mode<synchronous>, transform_indices = @transform_6, window_bounds = array<i64: 1, 128>}, {transform_indices = @transform_7, window_bounds = array<i64: 8, 4>}]} {
    %c0 = arith.constant 0 : index
    %c0_0 = arith.constant 0 : index
    %0 = vector.load %arg1[%c0, %c0_0] : memref<8x2xf32, #tpu.memory_space<vmem>>, vector<8x2xf32>
    %1 = vector.extract_strided_slice %0 {offsets = [0, 0], sizes = [8, 1], strides = [1, 1]} : vector<8x2xf32> to vector<8x1xf32>
    %c0_1 = arith.constant 0 : index
    %c0_2 = arith.constant 0 : index
    %2 = vector.load %arg2[%c0_1, %c0_2] : memref<2x128xf32, #tpu.memory_space<vmem>>, vector<1x128xf32>
    %3 = vector.broadcast %1 : vector<8x1xf32> to vector<8x128xf32>
    %4 = vector.broadcast %2 : vector<1x128xf32> to vector<8x128xf32>
    %5 = arith.mulf %3, %4 : vector<8x128xf32>
    %6 = vector.extract_strided_slice %0 {offsets = [0, 1], sizes = [8, 1], strides = [1, 1]} : vector<8x2xf32> to vector<8x1xf32>
    %c1 = arith.constant 1 : index
    %c0_3 = arith.constant 0 : index
    %7 = vector.load %arg2[%c1, %c0_3] : memref<2x128xf32, #tpu.memory_space<vmem>>, vector<1x128xf32>
    %8 = vector.broadcast %6 : vector<8x1xf32> to vector<8x128xf32>
    %9 = vector.broadcast %7 : vector<1x128xf32> to vector<8x128xf32>
    %10 = arith.mulf %8, %9 : vector<8x128xf32>
    %11 = arith.addf %5, %10 : vector<8x128xf32>
    %c0_4 = arith.constant 0 : index
    %c0_5 = arith.constant 0 : index
    %12 = vector.load %arg3[%c0_4, %c0_5] : memref<1x128xf32, #tpu.memory_space<vmem>>, vector<1x128xf32>
    %13 = vector.broadcast %12 : vector<1x128xf32> to vector<8x128xf32>
    %14 = arith.addf %11, %13 : vector<8x128xf32>
    %cst = arith.constant 0.000000e+00 : f32
    %15 = vector.broadcast %cst : f32 to vector<8x128xf32>
    %16 = arith.maximumf %14, %15 : vector<8x128xf32>
    %c0_6 = arith.constant 0 : index
    %c0_7 = arith.constant 0 : index
    %17 = vector.load %arg4[%c0_6, %c0_7] : memref<128x128xf32, #tpu.memory_space<vmem>>, vector<128x128xf32>
    %cst_8 = arith.constant dense<0.000000e+00> : vector<8x128xf32>
    %18 = tpu.matmul %16, %17, %cst_8 {dimension_numbers = #tpu.dot_dimension_numbers<[1], [0], [0], [1], [0, 0, 1, 1], [], []>} : vector<8x128xf32>, vector<128x128xf32>, vector<8x128xf32> -> vector<8x128xf32>
    %c0_9 = arith.constant 0 : index
    %c0_10 = arith.constant 0 : index
    %19 = vector.load %arg5[%c0_9, %c0_10] : memref<1x128xf32, #tpu.memory_space<vmem>>, vector<1x128xf32>
    %20 = vector.broadcast %19 : vector<1x128xf32> to vector<8x128xf32>
    %21 = arith.addf %18, %20 : vector<8x128xf32>
    %cst_11 = arith.constant 0.000000e+00 : f32
    %22 = vector.broadcast %cst_11 : f32 to vector<8x128xf32>
    %23 = arith.maximumf %21, %22 : vector<8x128xf32>
    %c0_12 = arith.constant 0 : index
    %c0_13 = arith.constant 0 : index
    %24 = vector.load %arg6[%c0_12, %c0_13] : memref<128x128xf32, #tpu.memory_space<vmem>>, vector<128x128xf32>
    %cst_14 = arith.constant dense<0.000000e+00> : vector<8x128xf32>
    %25 = tpu.matmul %23, %24, %cst_14 {dimension_numbers = #tpu.dot_dimension_numbers<[1], [0], [0], [1], [0, 0, 1, 1], [], []>} : vector<8x128xf32>, vector<128x128xf32>, vector<8x128xf32> -> vector<8x128xf32>
    %c0_15 = arith.constant 0 : index
    %c0_16 = arith.constant 0 : index
    %26 = vector.load %arg7[%c0_15, %c0_16] : memref<1x128xf32, #tpu.memory_space<vmem>>, vector<1x128xf32>
    %27 = vector.broadcast %26 : vector<1x128xf32> to vector<8x128xf32>
    %28 = arith.addf %25, %27 : vector<8x128xf32>
    %29 = vector.extract_strided_slice %28 {offsets = [0, 0], sizes = [8, 4], strides = [1, 1]} : vector<8x128xf32> to vector<8x4xf32>
    %c0_17 = arith.constant 0 : index
    %c0_18 = arith.constant 0 : index
    %30 = vector.load %arg8[%c0_17, %c0_18] : memref<8x4xf32, #tpu.memory_space<vmem>>, vector<8x4xf32>
    tpu.vector_store %arg8[%c0_17, %c0_18], %29 {strides = array<i32>} : memref<8x4xf32, #tpu.memory_space<vmem>>, vector<8x4xf32>,
    return
  }
  func.func @transform_0(%arg0: i32) -> (i32, i32) {
    %c0_i32 = arith.constant 0 : i32
    %c0_i32_0 = arith.constant 0 : i32
    return %arg0, %c0_i32 : i32, i32
  }
  func.func @transform_1(%arg0: i32) -> (i32, i32) {
    %c0_i32 = arith.constant 0 : i32
    %c0_i32_0 = arith.constant 0 : i32
    %c0_i32_1 = arith.constant 0 : i32
    return %c0_i32, %c0_i32_0 : i32, i32
  }
  func.func @transform_2(%arg0: i32) -> (i32, i32) {
    %c0_i32 = arith.constant 0 : i32
    %c0_i32_0 = arith.constant 0 : i32
    %c0_i32_1 = arith.constant 0 : i32
    return %c0_i32, %c0_i32_0 : i32, i32
  }
  func.func @transform_3(%arg0: i32) -> (i32, i32) {
    %c0_i32 = arith.constant 0 : i32
    %c0_i32_0 = arith.constant 0 : i32
    %c0_i32_1 = arith.constant 0 : i32
    return %c0_i32, %c0_i32_0 : i32, i32
  }
  func.func @transform_4(%arg0: i32) -> (i32, i32) {
    %c0_i32 = arith.constant 0 : i32
    %c0_i32_0 = arith.constant 0 : i32
    %c0_i32_1 = arith.constant 0 : i32
    return %c0_i32, %c0_i32_0 : i32, i32
  }
  func.func @transform_5(%arg0: i32) -> (i32, i32) {
    %c0_i32 = arith.constant 0 : i32
    %c0_i32_0 = arith.constant 0 : i32
    %c0_i32_1 = arith.constant 0 : i32
    return %c0_i32, %c0_i32_0 : i32, i32
  }
  func.func @transform_6(%arg0: i32) -> (i32, i32) {
    %c0_i32 = arith.constant 0 : i32
    %c0_i32_0 = arith.constant 0 : i32
    %c0_i32_1 = arith.constant 0 : i32
    return %c0_i32, %c0_i32_0 : i32, i32
  }
  func.func @transform_7(%arg0: i32) -> (i32, i32) {
    %c0_i32 = arith.constant 0 : i32
    %c0_i32_0 = arith.constant 0 : i32
    return %arg0, %c0_i32 : i32, i32
  }
}

</mosaic_0001>

<llo_original>
// kernel: tpu_custom_call.1
$region0: #{tpu_custom_call.1}
  #allocation0 [shape = 'u32[]', space=smem, size = 0x4, offset = 0x4, fixed_abs, tag = 'smem constant byte address 0x4 - core index']
  #allocation1 [shape = 'u32[144,128]{1,0:T(1,128)}', space=vmem, size = 0x12000, scoped, tag = 'internal scratch']
  %s0 = inlined_call_operand.vmem [shape: f32[8,2], index: 0, kind: input, shape index: {}]
  %s1 = inlined_call_operand.vmem [shape: f32[2,128], index: 1, kind: input, shape index: {}]
  %s2 = inlined_call_operand.vmem [shape: f32[1,128], index: 2, kind: input, shape index: {}]
  %s3 = inlined_call_operand.hbm [shape: f32[128,128], index: 3, kind: input, shape index: {}]
  %s4 = inlined_call_operand.vmem [shape: f32[1,128], index: 4, kind: input, shape index: {}]
  %s5 = inlined_call_operand.hbm [shape: f32[128,128], index: 5, kind: input, shape index: {}]
  %s6 = inlined_call_operand.vmem [shape: f32[1,128], index: 6, kind: input, shape index: {}]
  %s7 = inlined_call_operand.vmem [shape: f32[8,4], index: 7, kind: output, shape index: {}]
  %s8 = sld [smem:[#allocation0]]
  $region46: #{tpu_custom_call.1} parent=0
    _
  %s10 = ssub.s32 1, %s8
  %s11 = scalar_select 0, %s10, %s8
  $region1: #{tpu_custom_call.1} parent=0
    #allocation2 [shape = 'u8[65536]{0}', space=vmem, size = 0x10000, scoped, tag = 'input window, operand 3, single buffered']
    #allocation3 [shape = 's32[1]{0}', space=sflag, size = 0x4, scoped, tag = 'scoped memory for tpu_custom_call.1']
    #allocation4 [shape = 'u8[65536]{0}', space=vmem, size = 0x10000, scoped, tag = 'input window, operand 5, single buffered']
    #allocation5 [shape = 's32[1]{0}', space=sflag, size = 0x4, scoped, tag = 'scoped memory for tpu_custom_call.1']
    %12 = vsyncpa [#allocation3], 0
    %13 = vsyncpa [#allocation5], 0
    // Predicated region
    $region2: #{tpu_custom_call.1} parent=1 // pred_check
      _
    $region3: #{tpu_custom_call.1} parent=1 // pred_check_branch
      %15 = sbr.rel (0) target = $region5
    $region4: #{tpu_custom_call.1} parent=1 // pred_region
      _
    $region5: #{tpu_custom_call.1} parent=1 // pred_fallthru
      _
    // Predicated region
    $region6: #{tpu_custom_call.1} parent=1 // pred_check
      _
    $region7: #{tpu_custom_call.1} parent=1 // pred_check_branch
      %17 = sbr.rel (0) target = $region9
    $region8: #{tpu_custom_call.1} parent=1 // pred_region
      _
    $region9: #{tpu_custom_call.1} parent=1 // pred_fallthru
      _
    // Predicated region
    $region10: #{tpu_custom_call.1} parent=1 // pred_check
      _
    $region11: #{tpu_custom_call.1} parent=1 // pred_check_branch
      %19 = sbr.rel (0) target = $region13
    $region12: #{tpu_custom_call.1} parent=1 // pred_region
      _
    $region13: #{tpu_custom_call.1} parent=1 // pred_fallthru
      _
    // Predicated region
    $region14: #{tpu_custom_call.1} parent=1 // pred_check
      _
    $region15: #{tpu_custom_call.1} parent=1 // pred_check_branch
      %21 = sbr.rel (0) target = $region17
    $region16: #{tpu_custom_call.1} parent=1 // pred_region
      %s23 = ssub.s32 2048, 2048
      %24 = vsyncadd [#allocation3], %s23
      %s25 = sshll.u32 [#allocation2], 4
      %s26 = int_to_ptr.vmem [resolvable:$true] %s25
      %31 = dma.hbm_to_vmem [thread:$0]  %s3, 2048, %s26, [#allocation3], 128, 128, 8
    $region17: #{tpu_custom_call.1} parent=1 // pred_fallthru
      _
    // Predicated region
    $region18: #{tpu_custom_call.1} parent=1 // pred_check
      _
    $region19: #{tpu_custom_call.1} parent=1 // pred_check_branch
      %33 = sbr.rel (0) target = $region21
    $region20: #{tpu_custom_call.1} parent=1 // pred_region
      _
    $region21: #{tpu_custom_call.1} parent=1 // pred_fallthru
      _
    // Predicated region
    $region22: #{tpu_custom_call.1} parent=1 // pred_check
      _
    $region23: #{tpu_custom_call.1} parent=1 // pred_check_branch
      %35 = sbr.rel (0) target = $region25
    $region24: #{tpu_custom_call.1} parent=1 // pred_region
      %s37 = ssub.s32 2048, 2048
      %38 = vsyncadd [#allocation5], %s37
      %s39 = sshll.u32 [#allocation4], 4
      %s40 = int_to_ptr.vmem [resolvable:$true] %s39
      %45 = dma.hbm_to_vmem [thread:$0]  %s5, 2048, %s40, [#allocation5], 128, 128, 8
    $region25: #{tpu_custom_call.1} parent=1 // pred_fallthru
      _
    // Predicated region
    $region26: #{tpu_custom_call.1} parent=1 // pred_check
      _
    $region27: #{tpu_custom_call.1} parent=1 // pred_check_branch
      %47 = sbr.rel (0) target = $region29
    $region28: #{tpu_custom_call.1} parent=1 // pred_region
      _
    $region29: #{tpu_custom_call.1} parent=1 // pred_fallthru
      _
    // Predicated region
    $region30: #{tpu_custom_call.1} parent=1 // pred_check
      _
    $region31: #{tpu_custom_call.1} parent=1 // pred_check_branch
      %49 = sbr.rel (0) target = $region33
    $region32: #{tpu_custom_call.1} parent=1 // pred_region
      %50 = dma.done [#allocation3], 2048
    $region33: #{tpu_custom_call.1} parent=1 // pred_fallthru
      _
    // Predicated region
    $region34: #{tpu_custom_call.1} parent=1 // pred_check
      _
    $region35: #{tpu_custom_call.1} parent=1 // pred_check_branch
      %52 = sbr.rel (0) target = $region37
    $region36: #{tpu_custom_call.1} parent=1 // pred_region
      %53 = dma.done [#allocation5], 2048
    $region37: #{tpu_custom_call.1} parent=1 // pred_fallthru
      _
    %v54 = vld [vmem:[%s0] sm:$0xff]
    %v55 = vld [vmem:[%s1] sm:$0x1]
    %57 = vset.pattern.permute.xlu0 0
    %58 = vperm.xlu0 %57, %v54
    %v59 = vpop.permute.xlu0 %58
    %v61 = vlaneseq
    %v62 = vshrl.u32 %v61, 7
    %v63 = vsub.s32 0, %v62
    %v64 = vrot.slane %v55, %v63
    %v65 = vmul.f32 %v59, %v64
    %v66 = vld [vmem:[%s1 + $0x1] sm:$0x1]
    %67 = vset.pattern.permute.xlu0 1
    %68 = vperm.xlu0 %67, %v54
    %v69 = vpop.permute.xlu0 %68
    %v71 = vlaneseq
    %v72 = vshrl.u32 %v71, 7
    %v73 = vsub.s32 0, %v72
    %v74 = vrot.slane %v66, %v73
    %v75 = vmul.f32 %v69, %v74
    %v76 = vadd.f32 %v65, %v75
    %v77 = vld [vmem:[%s2] sm:$0x1]
    %v79 = vlaneseq
    %v80 = vshrl.u32 %v79, 7
    %v81 = vsub.s32 0, %v80
    %v82 = vrot.slane %v77, %v81
    %v84 = vadd.f32 %v76, %v82
    %v85 = vmax.f32 %v84, 0.0
    %v86 = vld [vmem:[#allocation2] sm:$0xff]
    %v87 = vld [vmem:[#allocation2 + $0x8] sm:$0xff]
    %v88 = vld [vmem:[#allocation2 + $0x10] sm:$0xff]
    %v89 = vld [vmem:[#allocation2 + $0x18] sm:$0xff]
    %v90 = vld [vmem:[#allocation2 + $0x20] sm:$0xff]
    %v91 = vld [vmem:[#allocation2 + $0x28] sm:$0xff]
    %v92 = vld [vmem:[#allocation2 + $0x30] sm:$0xff]
    %v93 = vld [vmem:[#allocation2 + $0x38] sm:$0xff]
    %v94 = vld [vmem:[#allocation2 + $0x40] sm:$0xff]
    %v95 = vld [vmem:[#allocation2 + $0x48] sm:$0xff]
    %v96 = vld [vmem:[#allocation2 + $0x50] sm:$0xff]
    %v97 = vld [vmem:[#allocation2 + $0x58] sm:$0xff]
    %v98 = vld [vmem:[#allocation2 + $0x60] sm:$0xff]
    %v99 = vld [vmem:[#allocation2 + $0x68] sm:$0xff]
    %v100 = vld [vmem:[#allocation2 + $0x70] sm:$0xff]
    %v101 = vld [vmem:[#allocation2 + $0x78] sm:$0xff]
    %v102 = vld [vmem:[%s4] sm:$0x1]
    %v104 = vlaneseq
    %v105 = vshrl.u32 %v104, 7
    %v106 = vsub.s32 0, %v105
    %v107 = vrot.slane %v102, %v106
    %109 = vmatprep.subr.mxu0 0.0
    %110 = vmatpush1.msra.mxu0 %v86
    %111 = vmatprep.subr.mxu0 0.0
    %112 = vmatpush1.msra.mxu0 %v87
    %113 = vmatprep.subr.mxu0 0.0
    %114 = vmatpush1.msra.mxu0 %v88
    %115 = vmatprep.subr.mxu0 0.0
    %116 = vmatpush1.msra.mxu0 %v89
    %117 = vmatprep.subr.mxu0 0.0
    %118 = vmatpush1.msra.mxu0 %v90
    %119 = vmatprep.subr.mxu0 0.0
    %120 = vmatpush1.msra.mxu0 %v91
    %121 = vmatprep.subr.mxu0 0.0
    %122 = vmatpush1.msra.mxu0 %v92
    %123 = vmatprep.subr.mxu0 0.0
    %124 = vmatpush1.msra.mxu0 %v93
    %125 = vmatprep.subr.mxu0 0.0
    %126 = vmatpush1.msra.mxu0 %v94
    %127 = vmatprep.subr.mxu0 0.0
    %128 = vmatpush1.msra.mxu0 %v95
    %129 = vmatprep.subr.mxu0 0.0
    %130 = vmatpush1.msra.mxu0 %v96
    %131 = vmatprep.subr.mxu0 0.0
    %132 = vmatpush1.msra.mxu0 %v97
    %133 = vmatprep.subr.mxu0 0.0
    %134 = vmatpush1.msra.mxu0 %v98
    %135 = vmatprep.subr.mxu0 0.0
    %136 = vmatpush1.msra.mxu0 %v99
    %137 = vmatprep.subr.mxu0 0.0
    %138 = vmatpush1.msra.mxu0 %v100
    %139 = vmatprep.subr.mxu0 0.0
    %140 = vmatpush1.msra.mxu0 %v101
    %141 = vmatprep.subr.mxu0 0.0
    %142 = vmatpush1.msra.mxu0 0.0
    %143 = vmatprep.subr.mxu0 0.0
    %144 = vmatpush1.msra.mxu0 0.0
    %145 = vmatprep.subr.mxu0 0.0
    %146 = vmatpush1.msra.mxu0 0.0
    %147 = vmatprep.subr.mxu0 0.0
    %148 = vmatpush1.msra.mxu0 0.0
    %149 = vmatprep.subr.mxu0 0.0
    %150 = vmatpush1.msra.mxu0 0.0
    %151 = vmatprep.subr.mxu0 0.0
    %152 = vmatpush1.msra.mxu0 0.0
    %153 = vmatprep.subr.mxu0 0.0
    %154 = vmatpush1.msra.mxu0 0.0
    %155 = vmatprep.subr.mxu0 0.0
    %156 = vmatpush1.msra.mxu0 0.0
    %157 = vmatprep.subr.mxu0 0.0
    %158 = vmatpush1.msra.mxu0 0.0
    %159 = vmatprep.subr.mxu0 0.0
    %160 = vmatpush1.msra.mxu0 0.0
    %161 = vmatprep.subr.mxu0 0.0
    %162 = vmatpush1.msra.mxu0 0.0
    %163 = vmatprep.subr.mxu0 0.0
    %164 = vmatpush1.msra.mxu0 0.0
    %165 = vmatprep.subr.mxu0 0.0
    %166 = vmatpush1.msra.mxu0 0.0
    %167 = vmatprep.subr.mxu0 0.0
    %168 = vmatpush1.msra.mxu0 0.0
    %169 = vmatprep.subr.mxu0 0.0
    %170 = vmatpush1.msra.mxu0 0.0
    %171 = vmatprep.subr.mxu0 0.0
    %172 = vmatpush1.msra.mxu0 0.0
    %173 = vmatprep.mubr.f32.mxu0 0.0
    %174 = vmatmul.mubr.f32.gmra.mrb[0].mxu0 %v85
    %v175 = vpop.f32.mrb[0].mxu0
    %v176 = vadd.f32 %v107, %v175
    %v177 = vpop.f32.mrb[0].mxu0
    %178 = vdwg.mxu0
    %v179 = vmax.f32 %v176, 0.0
    %v180 = vld [vmem:[#allocation4] sm:$0xff]
    %v181 = vld [vmem:[#allocation4 + $0x8] sm:$0xff]
    %v182 = vld [vmem:[#allocation4 + $0x10] sm:$0xff]
    %v183 = vld [vmem:[#allocation4 + $0x18] sm:$0xff]
    %v184 = vld [vmem:[#allocation4 + $0x20] sm:$0xff]
    %v185 = vld [vmem:[#allocation4 + $0x28] sm:$0xff]
    %v186 = vld [vmem:[#allocation4 + $0x30] sm:$0xff]
    %v187 = vld [vmem:[#allocation4 + $0x38] sm:$0xff]
    %v188 = vld [vmem:[#allocation4 + $0x40] sm:$0xff]
    %v189 = vld [vmem:[#allocation4 + $0x48] sm:$0xff]
    %v190 = vld [vmem:[#allocation4 + $0x50] sm:$0xff]
    %v191 = vld [vmem:[#allocation4 + $0x58] sm:$0xff]
    %v192 = vld [vmem:[#allocation4 + $0x60] sm:$0xff]
    %v193 = vld [vmem:[#allocation4 + $0x68] sm:$0xff]
    %v194 = vld [vmem:[#allocation4 + $0x70] sm:$0xff]
    %v195 = vld [vmem:[#allocation4 + $0x78] sm:$0xff]
    %v196 = vld [vmem:[%s6] sm:$0x1]
    %v198 = vlaneseq
    %v199 = vshrl.u32 %v198, 7
    %v200 = vsub.s32 0, %v199
    %v201 = vrot.slane %v196, %v200
    %203 = vmatprep.subr.mxu0 0.0
    %204 = vmatpush1.msra.mxu0 %v180
    %205 = vmatprep.subr.mxu0 0.0
    %206 = vmatpush1.msra.mxu0 %v181
    %207 = vmatprep.subr.mxu0 0.0
    %208 = vmatpush1.msra.mxu0 %v182
    %209 = vmatprep.subr.mxu0 0.0
    %210 = vmatpush1.msra.mxu0 %v183
    %211 = vmatprep.subr.mxu0 0.0
    %212 = vmatpush1.msra.mxu0 %v184
    %213 = vmatprep.subr.mxu0 0.0
    %214 = vmatpush1.msra.mxu0 %v185
    %215 = vmatprep.subr.mxu0 0.0
    %216 = vmatpush1.msra.mxu0 %v186
    %217 = vmatprep.subr.mxu0 0.0
    %218 = vmatpush1.msra.mxu0 %v187
    %219 = vmatprep.subr.mxu0 0.0
    %220 = vmatpush1.msra.mxu0 %v188
    %221 = vmatprep.subr.mxu0 0.0
    %222 = vmatpush1.msra.mxu0 %v189
    %223 = vmatprep.subr.mxu0 0.0
    %224 = vmatpush1.msra.mxu0 %v190
    %225 = vmatprep.subr.mxu0 0.0
    %226 = vmatpush1.msra.mxu0 %v191
    %227 = vmatprep.subr.mxu0 0.0
    %228 = vmatpush1.msra.mxu0 %v192
    %229 = vmatprep.subr.mxu0 0.0
    %230 = vmatpush1.msra.mxu0 %v193
    %231 = vmatprep.subr.mxu0 0.0
    %232 = vmatpush1.msra.mxu0 %v194
    %233 = vmatprep.subr.mxu0 0.0
    %234 = vmatpush1.msra.mxu0 %v195
    %235 = vmatprep.subr.mxu0 0.0
    %236 = vmatpush1.msra.mxu0 0.0
    %237 = vmatprep.subr.mxu0 0.0
    %238 = vmatpush1.msra.mxu0 0.0
    %239 = vmatprep.subr.mxu0 0.0
    %240 = vmatpush1.msra.mxu0 0.0
    %241 = vmatprep.subr.mxu0 0.0
    %242 = vmatpush1.msra.mxu0 0.0
    %243 = vmatprep.subr.mxu0 0.0
    %244 = vmatpush1.msra.mxu0 0.0
    %245 = vmatprep.subr.mxu0 0.0
    %246 = vmatpush1.msra.mxu0 0.0
    %247 = vmatprep.subr.mxu0 0.0
    %248 = vmatpush1.msra.mxu0 0.0
    %249 = vmatprep.subr.mxu0 0.0
    %250 = vmatpush1.msra.mxu0 0.0
    %251 = vmatprep.subr.mxu0 0.0
    %252 = vmatpush1.msra.mxu0 0.0
    %253 = vmatprep.subr.mxu0 0.0
    %254 = vmatpush1.msra.mxu0 0.0
    %255 = vmatprep.subr.mxu0 0.0
    %256 = vmatpush1.msra.mxu0 0.0
    %257 = vmatprep.subr.mxu0 0.0
    %258 = vmatpush1.msra.mxu0 0.0
    %259 = vmatprep.subr.mxu0 0.0
    %260 = vmatpush1.msra.mxu0 0.0
    %261 = vmatprep.subr.mxu0 0.0
    %262 = vmatpush1.msra.mxu0 0.0
    %263 = vmatprep.subr.mxu0 0.0
    %264 = vmatpush1.msra.mxu0 0.0
    %265 = vmatprep.subr.mxu0 0.0
    %266 = vmatpush1.msra.mxu0 0.0
    %267 = vmatprep.mubr.f32.mxu0 0.0
    %268 = vmatmul.mubr.f32.gmra.mrb[0].mxu0 %v179
    %v269 = vpop.f32.mrb[0].mxu0
    %v270 = vadd.f32 %v201, %v269
    %v271 = vpop.f32.mrb[0].mxu0
    %272 = vdwg.mxu0
    %vm273 = vcmask 31744
    %274 = vst.msk [vmem:[%s7] sm:$0xff] %vm273, %v270
    // Predicated region
    $region38: #{tpu_custom_call.1} parent=1 // pred_check
      _
    $region39: #{tpu_custom_call.1} parent=1 // pred_check_branch
      %276 = sbr.rel (0) target = $region41
    $region40: #{tpu_custom_call.1} parent=1 // pred_region
      _
    $region41: #{tpu_custom_call.1} parent=1 // pred_fallthru
      _
    // Predicated region
    $region42: #{tpu_custom_call.1} parent=1 // pred_check
      _
    $region43: #{tpu_custom_call.1} parent=1 // pred_check_branch
      %278 = sbr.rel (0) target = $region45
    $region44: #{tpu_custom_call.1} parent=1 // pred_region
      _
    $region45: #{tpu_custom_call.1} parent=1 // pred_fallthru
      _
    %279 = vsyncpa [#allocation3], 1
    %280 = vsyncpa [#allocation5], 1

</llo_original>
